<compile_context>
chip_gen: v7x
topology: tpu7x:2x2x1
jax: 0.10.0
libtpu: 0.0.40
codegen_flags: <defaults>
</compile_context>

<pallas_src>
import functools

import jax
import jax.numpy as jnp
from jax.experimental import pallas as pl
from jax.experimental.pallas import tpu as pltpu


def _triplet_loss_kernel(xa_ref, xp_ref, xn_ref, out_ref, acc_ref, *,
                         margin, normalize, block_rows, steps_per_split, batch):
    c = pl.program_id(0)          # parallel split (TensorCore on v7x)
    i = pl.program_id(1)          # streaming step within the split

    @pl.when(i == 0)
    def _init():
        acc_ref[0, 0] = jnp.float32(0.0)

    xa = xa_ref[...]
    xp = xp_ref[...]
    xn = xn_ref[...]
    if xa.dtype != jnp.float32:   # only cast when needed (v5e: casts cost full VALU slots)
        xa = xa.astype(jnp.float32)
        xp = xp.astype(jnp.float32)
        xn = xn.astype(jnp.float32)

    # Five lane reductions per row (XLU); everything else is (TB, 1) scalar-per-row math.
    ap = jnp.sum(xa * xp, axis=1, keepdims=True)
    an = jnp.sum(xa * xn, axis=1, keepdims=True)
    pp = jnp.sum(xp * xp, axis=1, keepdims=True)
    nn = jnp.sum(xn * xn, axis=1, keepdims=True)

    if normalize:
        aa = jnp.sum(xa * xa, axis=1, keepdims=True)
        ra = jax.lax.rsqrt(aa)    # EUP slot, effectively free here
        rp = jax.lax.rsqrt(pp)
        rn = jax.lax.rsqrt(nn)
        # pos - neg with the constant 2's cancelled (no epsilon, matching the torch module).
        diff = 2.0 * (an * ra * rn - ap * ra * rp)
    else:
        # ||a-p||^2 - ||a-n||^2 ; the |a|^2 terms cancel.
        diff = (pp - nn) - 2.0 * (ap - an)

    loss = jnp.maximum(diff + margin, 0.0)                      # (TB, 1)

    # Mask rows beyond the true batch size (padded tail tiles).
    row0 = (c * steps_per_split + i) * block_rows
    rows = row0 + jax.lax.broadcasted_iota(jnp.int32, loss.shape, 0)
    loss = jnp.where(rows < batch, loss, 0.0)

    acc_ref[0, 0] += jnp.sum(loss)

    @pl.when(i == steps_per_split - 1)
    def _finalize():
        # Fill this split's (8,128) output block with the partial sum; the wrapper reads
        # one element per split.
        out_ref[...] = jnp.full(out_ref.shape, acc_ref[0, 0], dtype=out_ref.dtype)


def triplet_loss(x_a, x_p, x_n, *, margin=1.0, normalize=True, reduction="mean"):
    """Pallas TPU implementation of TripletLoss.forward. Inputs: (B, D) arrays."""
    assert x_a.shape == x_p.shape == x_n.shape
    assert x_a.ndim == 2
    if reduction not in ("mean", "sum"):
        raise ValueError(f"unsupported reduction: {reduction!r}")

    B, D = x_a.shape
    NSPLIT = 2                                  # leading 'parallel' axis (2 TCs on v7x)
    itemsize = jnp.dtype(x_a.dtype).itemsize

    # ---- tile sizing from a VMEM streaming budget (3 inputs, double-buffered) ----
    budget_bytes = 8 * 1024 * 1024
    tb0 = budget_bytes // (3 * 2 * max(D, 1) * itemsize)
    tb0 = max(8, min(1024, (tb0 // 8) * 8))
    rows_per_split = pl.cdiv(B, NSPLIT)
    steps = pl.cdiv(rows_per_split, tb0)
    tb = ((pl.cdiv(rows_per_split, steps) + 7) // 8) * 8        # multiple of 8 sublanes
    b_pad = NSPLIT * steps * tb

    if b_pad != B:
        pad = ((0, b_pad - B), (0, 0))
        # Pad with ones (not zeros) so rsqrt never sees 0 on padded rows; they are masked
        # out of the sum inside the kernel anyway.
        x_a = jnp.pad(x_a, pad, constant_values=1)
        x_p = jnp.pad(x_p, pad, constant_values=1)
        x_n = jnp.pad(x_n, pad, constant_values=1)

    stream_bytes = 3 * 2 * tb * D * itemsize
    vmem_limit = int(min(48 * 2**20, max(2 * stream_bytes + 4 * 2**20, 16 * 2**20)))

    kernel = functools.partial(
        _triplet_loss_kernel,
        margin=float(margin),
        normalize=bool(normalize),
        block_rows=tb,
        steps_per_split=steps,
        batch=B,
    )

    in_spec = pl.BlockSpec((tb, D), lambda c, i: (c * steps + i, 0))
    out = pl.pallas_call(
        kernel,
        out_shape=jax.ShapeDtypeStruct((NSPLIT * 8, 128), jnp.float32),
        grid=(NSPLIT, steps),
        in_specs=[in_spec, in_spec, in_spec],
        out_specs=pl.BlockSpec((8, 128), lambda c, i: (c, 0)),
        scratch_shapes=[pltpu.SMEM((1, 1), jnp.float32)],
        compiler_params=pltpu.CompilerParams(
            dimension_semantics=("parallel", "arbitrary"),
            vmem_limit_bytes=vmem_limit,
        ),
    )(x_a, x_p, x_n)

    partials = out[::8, 0]                      # one scalar per split
    total = jnp.sum(partials)
    if reduction == "mean":
        return total / jnp.float32(B)
    return total


def _reference(x_a, x_p, x_n, margin=1.0, reduction="mean"):
    def norm(x):
        return x / jnp.sqrt(jnp.sum(x**2, axis=1, keepdims=True))
    x_a, x_p, x_n = norm(x_a), norm(x_p), norm(x_n)
    pos = jnp.sum((x_a - x_p) ** 2, axis=1)
    neg = jnp.sum((x_a - x_n) ** 2, axis=1)
    loss = jnp.maximum(pos - neg + margin, 0.0)
    return jnp.mean(loss) if reduction == "mean" else jnp.sum(loss)


if __name__ == "__main__":
    B, D = 10, 32          # odd batch exercises the padded/masked tail tile
    key = jax.random.PRNGKey(0)
    ka, kp, kn = jax.random.split(key, 3)
    x_a = jax.random.normal(ka, (B, D), dtype=jnp.float32)
    x_p = jax.random.normal(kp, (B, D), dtype=jnp.float32)
    x_n = jax.random.normal(kn, (B, D), dtype=jnp.float32)

    loss = triplet_loss(x_a, x_p, x_n, margin=1.0, normalize=True, reduction="mean")
    loss = jax.block_until_ready(loss)
    ref = _reference(x_a, x_p, x_n, margin=1.0, reduction="mean")
    assert jnp.allclose(loss, ref, atol=1e-5, rtol=1e-4), (loss, ref)

    loss_sum = jax.block_until_ready(
        triplet_loss(x_a, x_p, x_n, margin=1.0, normalize=True, reduction="sum"))
    ref_sum = _reference(x_a, x_p, x_n, margin=1.0, reduction="sum")
    assert jnp.allclose(loss_sum, ref_sum, atol=1e-4, rtol=1e-4), (loss_sum, ref_sum)

    print("KERNEL_OK")
</pallas_src>

<mosaic_0001>
module attributes {stable_mosaic.version = 11 : i64} {
  func.func @_triplet_loss_kernel(%arg0: i32, %arg1: i32, %arg2: memref<8x32xf32, #tpu.memory_space<vmem>>, %arg3: memref<8x32xf32, #tpu.memory_space<vmem>>, %arg4: memref<8x32xf32, #tpu.memory_space<vmem>>, %arg5: memref<8x128xf32, #tpu.memory_space<vmem>>, %arg6: memref<1x1xf32, #tpu.memory_space<smem>>) attributes {dimension_semantics = [#tpu.dimension_semantics<parallel>, #tpu.dimension_semantics<arbitrary>], iteration_bounds = array<i64: 2, 1>, scalar_prefetch = 0 : i64, scratch_operands = 1 : i64, tpu.core_type = #tpu.core_type<tc>, window_params = [{transform_indices = @transform_0, window_bounds = array<i64: 8, 32>}, {transform_indices = @transform_1, window_bounds = array<i64: 8, 32>}, {transform_indices = @transform_2, window_bounds = array<i64: 8, 32>}, {transform_indices = @transform_3, window_bounds = array<i64: 8, 128>}]} {
    %c0_i32 = arith.constant 0 : i32
    %0 = arith.cmpi eq, %arg1, %c0_i32 : i32
    %1 = arith.extui %0 : i1 to i32
    %c0_i32_0 = arith.constant 0 : i32
    %2 = arith.cmpi ne, %1, %c0_i32_0 : i32
    scf.if %2 {
      %cst_21 = arith.constant 0.000000e+00 : f32
      %c0_22 = arith.constant 0 : index
      %c0_23 = arith.constant 0 : index
      %55 = memref.load %arg6[%c0_22, %c0_23] : memref<1x1xf32, #tpu.memory_space<smem>>
      memref.store %cst_21, %arg6[%c0_22, %c0_23] : memref<1x1xf32, #tpu.memory_space<smem>>
    } else {
    }
    %c0 = arith.constant 0 : index
    %c0_1 = arith.constant 0 : index
    %3 = vector.load %arg2[%c0, %c0_1] : memref<8x32xf32, #tpu.memory_space<vmem>>, vector<8x32xf32>
    %c0_2 = arith.constant 0 : index
    %c0_3 = arith.constant 0 : index
    %4 = vector.load %arg3[%c0_2, %c0_3] : memref<8x32xf32, #tpu.memory_space<vmem>>, vector<8x32xf32>
    %c0_4 = arith.constant 0 : index
    %c0_5 = arith.constant 0 : index
    %5 = vector.load %arg4[%c0_4, %c0_5] : memref<8x32xf32, #tpu.memory_space<vmem>>, vector<8x32xf32>
    %6 = arith.mulf %3, %4 : vector<8x32xf32>
    %cst = arith.constant dense<0.000000e+00> : vector<8xf32>
    %7 = vector.multi_reduction <add>, %6, %cst [1] : vector<8x32xf32> to vector<8xf32>
    %8 = vector.shape_cast %7 : vector<8xf32> to vector<8x1xf32>
    %9 = arith.mulf %3, %5 : vector<8x32xf32>
    %cst_6 = arith.constant dense<0.000000e+00> : vector<8xf32>
    %10 = vector.multi_reduction <add>, %9, %cst_6 [1] : vector<8x32xf32> to vector<8xf32>
    %11 = vector.shape_cast %10 : vector<8xf32> to vector<8x1xf32>
    %12 = arith.mulf %4, %4 : vector<8x32xf32>
    %cst_7 = arith.constant dense<0.000000e+00> : vector<8xf32>
    %13 = vector.multi_reduction <add>, %12, %cst_7 [1] : vector<8x32xf32> to vector<8xf32>
    %14 = vector.shape_cast %13 : vector<8xf32> to vector<8x1xf32>
    %15 = arith.mulf %5, %5 : vector<8x32xf32>
    %cst_8 = arith.constant dense<0.000000e+00> : vector<8xf32>
    %16 = vector.multi_reduction <add>, %15, %cst_8 [1] : vector<8x32xf32> to vector<8xf32>
    %17 = vector.shape_cast %16 : vector<8xf32> to vector<8x1xf32>
    %18 = arith.mulf %3, %3 : vector<8x32xf32>
    %cst_9 = arith.constant dense<0.000000e+00> : vector<8xf32>
    %19 = vector.multi_reduction <add>, %18, %cst_9 [1] : vector<8x32xf32> to vector<8xf32>
    %20 = vector.shape_cast %19 : vector<8xf32> to vector<8x1xf32>
    %21 = math.rsqrt %20 : vector<8x1xf32>
    %22 = math.rsqrt %14 : vector<8x1xf32>
    %23 = math.rsqrt %17 : vector<8x1xf32>
    %24 = arith.mulf %11, %21 : vector<8x1xf32>
    %25 = arith.mulf %24, %23 : vector<8x1xf32>
    %26 = arith.mulf %8, %21 : vector<8x1xf32>
    %27 = arith.mulf %26, %22 : vector<8x1xf32>
    %28 = arith.subf %25, %27 : vector<8x1xf32>
    %cst_10 = arith.constant 2.000000e+00 : f32
    %29 = vector.broadcast %cst_10 : f32 to vector<8x1xf32>
    %30 = arith.mulf %29, %28 : vector<8x1xf32>
    %cst_11 = arith.constant 1.000000e+00 : f32
    %31 = vector.broadcast %cst_11 : f32 to vector<8x1xf32>
    %32 = arith.addf %30, %31 : vector<8x1xf32>
    %cst_12 = arith.constant 0.000000e+00 : f32
    %33 = vector.broadcast %cst_12 : f32 to vector<8x1xf32>
    %34 = arith.maximumf %32, %33 : vector<8x1xf32>
    %c1_i32 = arith.constant 1 : i32
    %35 = arith.muli %arg0, %c1_i32 : i32
    %36 = arith.addi %35, %arg1 : i32
    %c8_i32 = arith.constant 8 : i32
    %37 = arith.muli %36, %c8_i32 : i32
    %38 = tpu.iota {dimensions = array<i32: 0>} : vector<8x1xi32>
    %39 = vector.broadcast %37 : i32 to vector<8x1xi32>
    %40 = arith.addi %39, %38 : vector<8x1xi32>
    %c10_i32 = arith.constant 10 : i32
    %41 = vector.broadcast %c10_i32 : i32 to vector<8x1xi32>
    %42 = arith.cmpi slt, %40, %41 : vector<8x1xi32>
    %cst_13 = arith.constant 0.000000e+00 : f32
    %43 = vector.broadcast %cst_13 : f32 to vector<8x1xf32>
    %44 = arith.select %42, %34, %43 : vector<8x1xi1>, vector<8x1xf32>
    %c0_14 = arith.constant 0 : index
    %c0_15 = arith.constant 0 : index
    %45 = memref.load %arg6[%c0_14, %c0_15] : memref<1x1xf32, #tpu.memory_space<smem>>
    %46 = vector.shape_cast %44 : vector<8x1xf32> to vector<1x8x1xf32>
    %cst_16 = arith.constant dense<0.000000e+00> : vector<1xf32>
    %47 = vector.multi_reduction <add>, %46, %cst_16 [1, 2] : vector<1x8x1xf32> to vector<1xf32>
    %48 = vector.shape_cast %47 : vector<1xf32> to vector<1x1x1xf32>
    %49 = vector.extract %48[0, 0, 0] : f32 from vector<1x1x1xf32>
    %50 = arith.addf %45, %49 : f32
    %c0_17 = arith.constant 0 : index
    %c0_18 = arith.constant 0 : index
    %51 = memref.load %arg6[%c0_17, %c0_18] : memref<1x1xf32, #tpu.memory_space<smem>>
    memref.store %50, %arg6[%c0_17, %c0_18] : memref<1x1xf32, #tpu.memory_space<smem>>
    %c0_i32_19 = arith.constant 0 : i32
    %52 = arith.cmpi eq, %arg1, %c0_i32_19 : i32
    %53 = arith.extui %52 : i1 to i32
    %c0_i32_20 = arith.constant 0 : i32
    %54 = arith.cmpi ne, %53, %c0_i32_20 : i32
    scf.if %54 {
      %c0_21 = arith.constant 0 : index
      %c0_22 = arith.constant 0 : index
      %55 = memref.load %arg6[%c0_21, %c0_22] : memref<1x1xf32, #tpu.memory_space<smem>>
      %56 = vector.broadcast %55 : f32 to vector<8x128xf32>
      %c0_23 = arith.constant 0 : index
      %c0_24 = arith.constant 0 : index
      %57 = vector.load %arg5[%c0_23, %c0_24] : memref<8x128xf32, #tpu.memory_space<vmem>>, vector<8x128xf32>
      tpu.vector_store %arg5[%c0_23, %c0_24], %56 {strides = array<i32>} : memref<8x128xf32, #tpu.memory_space<vmem>>, vector<8x128xf32>,
    } else {
    }
    return
  }
  func.func @transform_0(%arg0: i32, %arg1: i32) -> (i32, i32) {
    %c1_i32 = arith.constant 1 : i32
    %0 = arith.muli %arg0, %c1_i32 : i32
    %1 = arith.addi %0, %arg1 : i32
    %c0_i32 = arith.constant 0 : i32
    %c0_i32_0 = arith.constant 0 : i32
    return %1, %c0_i32 : i32, i32
  }
  func.func @transform_1(%arg0: i32, %arg1: i32) -> (i32, i32) {
    %c1_i32 = arith.constant 1 : i32
    %0 = arith.muli %arg0, %c1_i32 : i32
    %1 = arith.addi %0, %arg1 : i32
    %c0_i32 = arith.constant 0 : i32
    %c0_i32_0 = arith.constant 0 : i32
    return %1, %c0_i32 : i32, i32
  }
  func.func @transform_2(%arg0: i32, %arg1: i32) -> (i32, i32) {
    %c1_i32 = arith.constant 1 : i32
    %0 = arith.muli %arg0, %c1_i32 : i32
    %1 = arith.addi %0, %arg1 : i32
    %c0_i32 = arith.constant 0 : i32
    %c0_i32_0 = arith.constant 0 : i32
    return %1, %c0_i32 : i32, i32
  }
  func.func @transform_3(%arg0: i32, %arg1: i32) -> (i32, i32) {
    %c0_i32 = arith.constant 0 : i32
    %c0_i32_0 = arith.constant 0 : i32
    return %arg0, %c0_i32 : i32, i32
  }
}

</mosaic_0001>

<llo_original>
// kernel: tpu_custom_call.1
$region0: #{tpu_custom_call.1}
  #allocation0 [shape = 'u32[]', space=smem, size = 0x4, offset = 0x4, fixed_abs, tag = 'smem constant byte address 0x4 - core index']
  #allocation1 [shape = 'u32[144,128]{1,0:T(1,128)}', space=vmem, size = 0x12000, scoped, tag = 'internal scratch']
  #allocation2 [shape = 'f32[1,1]{1,0:T(1,128)}', space=smem, size = 0x200, scoped, tag = 'scratch operand']
  %s0 = inlined_call_operand.hbm [shape: f32[16,32], index: 0, kind: input, shape index: {}]
  %s1 = inlined_call_operand.hbm [shape: f32[16,32], index: 1, kind: input, shape index: {}]
  %s2 = inlined_call_operand.hbm [shape: f32[16,32], index: 2, kind: input, shape index: {}]
  %s3 = inlined_call_operand.hbm [shape: f32[16,128], index: 3, kind: output, shape index: {}]
  %s4 = sld [smem:[#allocation0]]
  $region65: #{tpu_custom_call.1} parent=0
    _
  %s6 = ssub.s32 1, %s4
  %s7 = scalar_select 0, %s6, %s4
  $region1: #{tpu_custom_call.1} parent=0
    #allocation3 [shape = 'u8[8192]{0}', space=vmem, size = 0x2000, scoped, tag = 'input window, operand 0']
    #allocation4 [shape = 's32[2]{0}', space=sflag, size = 0x8, scoped, tag = 'scoped memory for tpu_custom_call.1']
    #allocation5 [shape = 's32[2]{0}', space=sflag, size = 0x8, scoped, tag = 'scoped memory for tpu_custom_call.1']
    #allocation6 [shape = 'u8[8192]{0}', space=vmem, size = 0x2000, scoped, tag = 'input window, operand 1']
    #allocation7 [shape = 's32[2]{0}', space=sflag, size = 0x8, scoped, tag = 'scoped memory for tpu_custom_call.1']
    #allocation8 [shape = 'u8[8192]{0}', space=vmem, size = 0x2000, scoped, tag = 'input window, operand 2']
    #allocation9 [shape = 'u8[8192]{0}', space=vmem, size = 0x2000, scoped, tag = 'output window, operand 0']
    %8 = vsyncpa [#allocation4], 0
    %s9 = scalar_lea.sflag [#allocation4], 1
    %10 = vsyncpa %s9, 0
    %11 = vsyncpa [#allocation7], 0
    %s12 = scalar_lea.sflag [#allocation7], 1
    %13 = vsyncpa %s12, 0
    %14 = vsyncpa [#allocation5], 0
    %s15 = scalar_lea.sflag [#allocation5], 1
    %16 = vsyncpa %s15, 0
    loop: start=0, step=1, limit=4
    $region2: #{tpu_custom_call.1} parent=1 // loop_pre_header
      _
    $region3: #{tpu_custom_call.1} parent=1 // loop_header
      %s18 = sphi 0, %s22
      %p19 = scmp.ge.s32.totalorder %s18, 4
      %s25 = sphi 0, %s37
      %s26 = sphi 0, %s33
      %s27 = sphi 0, %s25
      %s28 = sphi 0, %s26
      %s29 = sphi 0, %s27
      %s30 = sphi 0, %s28
      %s42 = sphi 0, %s44
      %s45 = sphi 0, %s42
      %s46 = sphi 0, %s45
      %s62 = sphi 0, %s46
      %s70 = sphi 0, %s72
      %s73 = sphi 0, %s70
      %s74 = sphi 0, %s73
      %s90 = sphi 0, %s74
      %s98 = sphi 0, %s100
      %s101 = sphi 0, %s98
      %s102 = sphi 0, %s101
      %s118 = sphi 0, %s102
      %s124 = sphi 0, %s126
      %s127 = sphi 0, %s124
      %s128 = sphi 0, %s127
      %s144 = sphi 0, %s128
    $region4: #{tpu_custom_call.1} parent=1 // loop_header_branch
      %21 = sbr.rel (%p19) target = $region8
    $region5: #{tpu_custom_call.1} parent=1 // loop_body
      %s23 = ssub.s32 %s18, 1
      %s24 = ssub.s32 %s18, 2
      %s31 = sadd.s32 1, %s26
      %p32 = scmp.ge.s32.totalorder %s31, 1
      %s33 = scalar_select %p32, 0, %s31
      %s34 = sadd.s32 1, %s25
      %s35 = scalar_select %p32, %s34, %s25
      %p36 = scmp.ge.s32.totalorder %s35, 2
      %s37 = scalar_select %p36, 0, %s35
      %s38 = sadd.s32 %s25, %s26
      %s39 = sadd.s32 %s37, %s33
      %s40 = ssub.s32 %s38, %s39
      %p41 = scmp.eq.s32.totalorder %s40, 0
      %s43 = sadd.s32 %s42, 1
      %s44 = scalar_select %p41, %s42, %s43
      %p47 = pneg %p41
      %p48 = scmp.eq.s32.totalorder %s18, 1
      %p49 = por %p47, %p48
      %p50 = scmp.ne.s32.totalorder %s42, %s45
      %p51 = scmp.eq.s32.totalorder %s18, 0
      %p52 = por %p50, %p51
      %p53 = scmp.ne.s32.totalorder %s42, %s45
      %p54 = scmp.eq.s32.totalorder %s23, 1
      %p55 = por %p53, %p54
      %p56 = scmp.ne.s32.totalorder %s45, %s46
      %p57 = scmp.eq.s32.totalorder %s23, 0
      %p58 = por %p56, %p57
      %p59 = scmp.ne.s32.totalorder %s45, %s46
      %p60 = scmp.eq.s32.totalorder %s24, 1
      %p61 = por %p59, %p60
      %p63 = scmp.ne.s32.totalorder %s46, %s62
      %p64 = scmp.eq.s32.totalorder %s24, 0
      %p65 = por %p63, %p64
      %s66 = sadd.s32 %s25, %s26
      %s67 = sadd.s32 %s37, %s33
      %s68 = ssub.s32 %s66, %s67
      %p69 = scmp.eq.s32.totalorder %s68, 0
      %s71 = sadd.s32 %s70, 1
      %s72 = scalar_select %p69, %s70, %s71
      %p75 = pneg %p69
      %p76 = scmp.eq.s32.totalorder %s18, 1
      %p77 = por %p75, %p76
      %p78 = scmp.ne.s32.totalorder %s70, %s73
      %p79 = scmp.eq.s32.totalorder %s18, 0
      %p80 = por %p78, %p79
      %p81 = scmp.ne.s32.totalorder %s70, %s73
      %p82 = scmp.eq.s32.totalorder %s23, 1
      %p83 = por %p81, %p82
      %p84 = scmp.ne.s32.totalorder %s73, %s74
      %p85 = scmp.eq.s32.totalorder %s23, 0
      %p86 = por %p84, %p85
      %p87 = scmp.ne.s32.totalorder %s73, %s74
      %p88 = scmp.eq.s32.totalorder %s24, 1
      %p89 = por %p87, %p88
      %p91 = scmp.ne.s32.totalorder %s74, %s90
      %p92 = scmp.eq.s32.totalorder %s24, 0
      %p93 = por %p91, %p92
      %s94 = sadd.s32 %s25, %s26
      %s95 = sadd.s32 %s37, %s33
      %s96 = ssub.s32 %s94, %s95
      %p97 = scmp.eq.s32.totalorder %s96, 0
      %s99 = sadd.s32 %s98, 1
      %s100 = scalar_select %p97, %s98, %s99
      %p103 = pneg %p97
      %p104 = scmp.eq.s32.totalorder %s18, 1
      %p105 = por %p103, %p104
      %p106 = scmp.ne.s32.totalorder %s98, %s101
      %p107 = scmp.eq.s32.totalorder %s18, 0
      %p108 = por %p106, %p107
      %p109 = scmp.ne.s32.totalorder %s98, %s101
      %p110 = scmp.eq.s32.totalorder %s23, 1
      %p111 = por %p109, %p110
      %p112 = scmp.ne.s32.totalorder %s101, %s102
      %p113 = scmp.eq.s32.totalorder %s23, 0
      %p114 = por %p112, %p113
      %p115 = scmp.ne.s32.totalorder %s101, %s102
      %p116 = scmp.eq.s32.totalorder %s24, 1
      %p117 = por %p115, %p116
      %p119 = scmp.ne.s32.totalorder %s102, %s118
      %p120 = scmp.eq.s32.totalorder %s24, 0
      %p121 = por %p119, %p120
      %s122 = ssub.s32 %s25, %s37
      %p123 = scmp.eq.s32.totalorder %s122, 0
      %s125 = sadd.s32 %s124, 1
      %s126 = scalar_select %p123, %s124, %s125
      %p129 = pneg %p123
      %p130 = scmp.eq.s32.totalorder %s18, 1
      %p131 = por %p129, %p130
      %p132 = scmp.ne.s32.totalorder %s124, %s127
      %p133 = scmp.eq.s32.totalorder %s18, 0
      %p134 = por %p132, %p133
      %p135 = scmp.ne.s32.totalorder %s124, %s127
      %p136 = scmp.eq.s32.totalorder %s23, 1
      %p137 = por %p135, %p136
      %p138 = scmp.ne.s32.totalorder %s127, %s128
      %p139 = scmp.eq.s32.totalorder %s23, 0
      %p140 = por %p138, %p139
      %p141 = scmp.ne.s32.totalorder %s127, %s128
      %p142 = scmp.eq.s32.totalorder %s24, 1
      %p143 = por %p141, %p142
      %p145 = scmp.ne.s32.totalorder %s128, %s144
      %p146 = scmp.eq.s32.totalorder %s24, 0
      %p147 = por %p145, %p146
      %p148 = scmp.le.s32.totalorder 1, %s18
      %p149 = scmp.lt.s32.totalorder %s18, 3
      %p150 = pnand %p148, %p149
      %p151 = pneg %p150
      // Predicated region
      $region9: #{tpu_custom_call.1} parent=5 // pred_check
        _
      $region10: #{tpu_custom_call.1} parent=5 // pred_check_branch
        %153 = sbr.rel (%p150) target = $region12
      $region11: #{tpu_custom_call.1} parent=5 // pred_region
        %s154 = ssub.s32 %s18, 1
      $region12: #{tpu_custom_call.1} parent=5 // pred_fallthru
        _
      %p155 = scmp.lt.s32.totalorder %s18, 2
      // Predicated region
      $region13: #{tpu_custom_call.1} parent=5 // pred_check
        %p156 = pneg %p155
      $region14: #{tpu_custom_call.1} parent=5 // pred_check_branch
        %158 = sbr.rel (%p156) target = $region16
      $region15: #{tpu_custom_call.1} parent=5 // pred_region
        // Predicated region
        $region17: #{tpu_custom_call.1} parent=15 // pred_check
          %p159 = pneg %p52
        $region18: #{tpu_custom_call.1} parent=15 // pred_check_branch
          %161 = sbr.rel (%p159) target = $region20
        $region19: #{tpu_custom_call.1} parent=15 // pred_region
          %s162 = sand.u32 %s42, 1
          %s163 = scalar_lea.sflag [#allocation4], %s162
          %s164 = sand.u32 %s42, 1
          %s165 = smul.addr %s164, 8
          %s166 = scalar_lea.vmem [#allocation3], %s165
          %s167 = sadd.s32 %s25, %s26
          %s169 = ssub.s32 128, 128
          %170 = vsyncadd %s163, %s169
          %s171 = smul.addr %s167, 128
          %s172 = scalar_lea.hbm %s0, %s171
          %s174 = sshll.u32 %s166, 4
          %s175 = int_to_ptr.vmem [resolvable:$true] %s174
          %177 = dma.hbm_to_vmem [thread:$0]  %s172, 128, %s175, %s163
        $region20: #{tpu_custom_call.1} parent=15 // pred_fallthru
          _
        // Predicated region
        $region21: #{tpu_custom_call.1} parent=15 // pred_check
          %p178 = pneg %p80
        $region22: #{tpu_custom_call.1} parent=15 // pred_check_branch
          %180 = sbr.rel (%p178) target = $region24
        $region23: #{tpu_custom_call.1} parent=15 // pred_region
          %s181 = sand.u32 %s18, 1
          %s182 = scalar_lea.sflag [#allocation7], %s181
          %s183 = sand.u32 %s70, 1
          %s184 = smul.addr %s183, 8
          %s185 = scalar_lea.vmem [#allocation6], %s184
          %s186 = sadd.s32 %s25, %s26
          %s188 = ssub.s32 128, 128
          %189 = vsyncadd %s182, %s188
          %s190 = smul.addr %s186, 128
          %s191 = scalar_lea.hbm %s1, %s190
          %s193 = sshll.u32 %s185, 4
          %s194 = int_to_ptr.vmem [resolvable:$true] %s193
          %196 = dma.hbm_to_vmem [thread:$0]  %s191, 128, %s194, %s182
        $region24: #{tpu_custom_call.1} parent=15 // pred_fallthru
          _
        // Predicated region
        $region25: #{tpu_custom_call.1} parent=15 // pred_check
          %p197 = pneg %p108
        $region26: #{tpu_custom_call.1} parent=15 // pred_check_branch
          %199 = sbr.rel (%p197) target = $region28
        $region27: #{tpu_custom_call.1} parent=15 // pred_region
          %s200 = sand.u32 %s18, 1
          %s201 = scalar_lea.sflag [#allocation7], %s200
          %s202 = sand.u32 %s98, 1
          %s203 = smul.addr %s202, 8
          %s204 = scalar_lea.vmem [#allocation8], %s203
          %s205 = sadd.s32 %s25, %s26
          %s207 = ssub.s32 128, 128
          %208 = vsyncadd %s201, %s207
          %s209 = smul.addr %s205, 128
          %s210 = scalar_lea.hbm %s2, %s209
          %s212 = sshll.u32 %s204, 4
          %s213 = int_to_ptr.vmem [resolvable:$true] %s212
          %215 = dma.hbm_to_vmem [thread:$0]  %s210, 128, %s213, %s201
        $region28: #{tpu_custom_call.1} parent=15 // pred_fallthru
          _
      $region16: #{tpu_custom_call.1} parent=5 // pred_fallthru
        _
      %p216 = scmp.le.s32.totalorder 1, %s18
      %p217 = scmp.lt.s32.totalorder %s18, 3
      %p218 = pnand %p216, %p217
      %p219 = pneg %p218
      // Predicated region
      $region29: #{tpu_custom_call.1} parent=5 // pred_check
        _
      $region30: #{tpu_custom_call.1} parent=5 // pred_check_branch
        %221 = sbr.rel (%p218) target = $region32
      $region31: #{tpu_custom_call.1} parent=5 // pred_region
        %s222 = ssub.s32 %s18, 1
        %s223 = sand.u32 %s45, 1
        %s224 = scalar_lea.sflag [#allocation4], %s223
        %s225 = sand.u32 %s45, 1
        %s226 = smul.addr %s225, 8
        %s227 = scalar_lea.vmem [#allocation3], %s226
        // Predicated region
        $region33: #{tpu_custom_call.1} parent=31 // pred_check
          %p228 = pneg %p58
        $region34: #{tpu_custom_call.1} parent=31 // pred_check_branch
          %230 = sbr.rel (%p228) target = $region36
        $region35: #{tpu_custom_call.1} parent=31 // pred_region
          %231 = dma.done %s224, 128
        $region36: #{tpu_custom_call.1} parent=31 // pred_fallthru
          _
        %s232 = sand.u32 %s23, 1
        %s233 = scalar_lea.sflag [#allocation7], %s232
        %s234 = sand.u32 %s73, 1
        %s235 = smul.addr %s234, 8
        %s236 = scalar_lea.vmem [#allocation6], %s235
        // Predicated region
        $region37: #{tpu_custom_call.1} parent=31 // pred_check
          %p237 = pneg %p86
        $region38: #{tpu_custom_call.1} parent=31 // pred_check_branch
          %239 = sbr.rel (%p237) target = $region40
        $region39: #{tpu_custom_call.1} parent=31 // pred_region
          %240 = dma.done %s233, 128
        $region40: #{tpu_custom_call.1} parent=31 // pred_fallthru
          _
        %s241 = sand.u32 %s23, 1
        %s242 = scalar_lea.sflag [#allocation7], %s241
        %s243 = sand.u32 %s101, 1
        %s244 = smul.addr %s243, 8
        %s245 = scalar_lea.vmem [#allocation8], %s244
        // Predicated region
        $region41: #{tpu_custom_call.1} parent=31 // pred_check
          %p246 = pneg %p114
        $region42: #{tpu_custom_call.1} parent=31 // pred_check_branch
          %248 = sbr.rel (%p246) target = $region44
        $region43: #{tpu_custom_call.1} parent=31 // pred_region
          %249 = dma.done %s242, 128
        $region44: #{tpu_custom_call.1} parent=31 // pred_fallthru
          _
        %s250 = sand.u32 %s45, 1
        %s251 = scalar_lea.sflag [#allocation4], %s250
        %s252 = sand.u32 %s45, 1
        %s253 = smul.addr %s252, 8
        %s254 = scalar_lea.vmem [#allocation3], %s253
        %p255 = pneg %p58
        %p256 = pneg %p55
        %s257 = sand.u32 %s23, 1
        %s258 = scalar_lea.sflag [#allocation7], %s257
        %s259 = sand.u32 %s73, 1
        %s260 = smul.addr %s259, 8
        %s261 = scalar_lea.vmem [#allocation6], %s260
        %p262 = pneg %p86
        %p263 = pneg %p83
        %s264 = sand.u32 %s23, 1
        %s265 = scalar_lea.sflag [#allocation7], %s264
        %s266 = sand.u32 %s101, 1
        %s267 = smul.addr %s266, 8
        %s268 = scalar_lea.vmem [#allocation8], %s267
        %p269 = pneg %p114
        %p270 = pneg %p111
        %p271 = pneg %p140
        %p272 = pneg %p137
        %s273 = sand.u32 %s127, 1
        %s274 = scalar_lea.sflag [#allocation5], %s273
        %s275 = sand.u32 %s127, 1
        %s276 = smul.addr %s275, 8
        %s277 = scalar_lea.vmem [#allocation9], %s276
        %s278 = sadd.s32 %s27, %s28
        %s279 = sadd.s32 %s27, %s28
        %s280 = sadd.s32 %s27, %s28
        %p281 = scmp.eq.s32.totalorder %s28, 0
        // Predicated region
        $region45: #{tpu_custom_call.1} parent=31 // pred_check
          %p282 = pneg %p281
        $region46: #{tpu_custom_call.1} parent=31 // pred_check_branch
          %284 = sbr.rel (%p282) target = $region48
        $region47: #{tpu_custom_call.1} parent=31 // pred_region
          %s285 = scalar_lea.smem [#allocation2], 0
          %286 = sst [smem:[%s285]] 0.0
        $region48: #{tpu_custom_call.1} parent=31 // pred_fallthru
          _
        %v287 = vld [vmem:[%s227] sm:$0xff]
        %v288 = vld [vmem:[%s236] sm:$0xff]
        %v289 = vld [vmem:[%s245] sm:$0xff]
        %v290 = vmul.f32 %v287, %v288
        %vm291 = vcmask 261120
        %v292 = vsel %vm291, %v290, 0.0
        %293 = vadd.xlane.f32.xlu0 %v292
        %v294 = vpop.xlane.xlu0 %293
        %v295 = vmul.f32 %v287, %v289
        %v296 = vsel %vm291, %v295, 0.0
        %297 = vadd.xlane.f32.xlu0 %v296
        %v298 = vpop.xlane.xlu0 %297
        %v299 = vmul.f32 %v288, %v288
        %v300 = vsel %vm291, %v299, 0.0
        %301 = vadd.xlane.f32.xlu0 %v300
        %v302 = vpop.xlane.xlu0 %301
        %v303 = vmul.f32 %v289, %v289
        %v304 = vsel %vm291, %v303, 0.0
        %305 = vadd.xlane.f32.xlu0 %v304
        %v306 = vpop.xlane.xlu0 %305
        %v307 = vmul.f32 %v287, %v287
        %v308 = vsel %vm291, %v307, 0.0
        %309 = vadd.xlane.f32.xlu0 %v308
        %v310 = vpop.xlane.xlu0 %309
        %v311 = vrsqrt.pop %v310
        %v312 = vrsqrt.pop %v302
        %v313 = vrsqrt.pop %v306
        %v314 = vmul.f32 %v298, %v311
        %v315 = vmul.f32 %v314, %v313
        %v316 = vmul.f32 %v294, %v311
        %v317 = vmul.f32 %v316, %v312
        %v318 = vsub.f32 %v315, %v317
        %v319 = vmul.f32 %v318, 2.0
        %v320 = vadd.f32 %v319, 1.0
        %v321 = vmax.f32 %v320, 0.0
        %s322 = sadd.s32 %s27, %s28
        %s323 = smul.u32 %s322, 8
        %v324 = vlaneseq
        %v325 = vshrl.u32 %v324, 7
        %v326 = vstv %s323
        %v327 = vadd.s32 %v326, %v325
        %vm328 = vcmp.lt.s32.totalorder %v327, 10
        %v329 = vsel %vm328, %v321, 0.0
        %s330 = sld [smem:[#allocation2]]
        %vm331 = vcmask 7168
        %v332 = vsel %vm331, %v329, 0.0
        %333 = vadd.xlane.f32.xlu0 %v332
        %v334 = vpop.xlane.xlu0 %333
        %v335 = vrot.slane %v334, 4
        %v336 = vadd.f32 %v334, %v335
        %v337 = vrot.slane %v336, 2
        %v338 = vadd.f32 %v336, %v337
        %v339 = vrot.slane %v338, 1
        %v340 = vadd.f32 %v338, %v339
        %s341 = vtos %v340
        %s342 = sadd.f32 %s330, %s341
        %s343 = scalar_lea.smem [#allocation2], 0
        %344 = sst [smem:[%s343]] %s342
        // Predicated region
        $region49: #{tpu_custom_call.1} parent=31 // pred_check
          %p345 = pneg %p281
        $region50: #{tpu_custom_call.1} parent=31 // pred_check_branch
          %347 = sbr.rel (%p345) target = $region52
        $region51: #{tpu_custom_call.1} parent=31 // pred_region
          %s348 = sld [smem:[#allocation2]]
          %v349 = vstv %s348
          %350 = vst [vmem:[%s277] sm:$0xff] %v349
        $region52: #{tpu_custom_call.1} parent=31 // pred_fallthru
          _
        %s351 = sand.u32 %s127, 1
        %s352 = scalar_lea.sflag [#allocation5], %s351
        %s353 = sand.u32 %s127, 1
        %s354 = smul.addr %s353, 8
        %s355 = scalar_lea.vmem [#allocation9], %s354
        // Predicated region
        $region53: #{tpu_custom_call.1} parent=31 // pred_check
          %p356 = pneg %p137
        $region54: #{tpu_custom_call.1} parent=31 // pred_check_branch
          %358 = sbr.rel (%p356) target = $region56
        $region55: #{tpu_custom_call.1} parent=31 // pred_region
          %s360 = ssub.s32 128, 128
          %361 = vsyncadd %s352, %s360
          %s362 = smul.addr %s27, 128
          %s363 = scalar_lea.hbm %s3, %s362
          %s365 = sshll.u32 %s355, 4
          %s366 = int_to_ptr.vmem [resolvable:$true] %s365
          %368 = dma.vmem_to_hbm [thread:$0]  %s366, 128, %s363, %s352
        $region56: #{tpu_custom_call.1} parent=31 // pred_fallthru
          _
      $region32: #{tpu_custom_call.1} parent=5 // pred_fallthru
        _
      %p369 = scmp.le.s32.totalorder 2, %s18
      // Predicated region
      $region57: #{tpu_custom_call.1} parent=5 // pred_check
        %p370 = pneg %p369
      $region58: #{tpu_custom_call.1} parent=5 // pred_check_branch
        %372 = sbr.rel (%p370) target = $region60
      $region59: #{tpu_custom_call.1} parent=5 // pred_region
        %s373 = ssub.s32 %s18, 2
        // Predicated region
        $region61: #{tpu_custom_call.1} parent=59 // pred_check
          %p374 = pneg %p143
        $region62: #{tpu_custom_call.1} parent=59 // pred_check_branch
          %376 = sbr.rel (%p374) target = $region64
        $region63: #{tpu_custom_call.1} parent=59 // pred_region
          %s377 = sand.u32 %s128, 1
          %s378 = scalar_lea.sflag [#allocation5], %s377
          %s379 = sand.u32 %s128, 1
          %s380 = smul.addr %s379, 8
          %s381 = scalar_lea.vmem [#allocation9], %s380
          %382 = dma.done %s378, 128
        $region64: #{tpu_custom_call.1} parent=59 // pred_fallthru
          _
      $region60: #{tpu_custom_call.1} parent=5 // pred_fallthru
        _
    $region6: #{tpu_custom_call.1} parent=1 // loop_footer
      %s22 = sadd.s32 1, %s18
    $region7: #{tpu_custom_call.1} parent=1 // loop_footer_branch
      %17 = sbr.rel target = $region3
    $region8: #{tpu_custom_call.1} parent=1 // loop_exit
      _
    %383 = vsyncpa [#allocation4], 1
    %s384 = scalar_lea.sflag [#allocation4], 1
    %385 = vsyncpa %s384, 1
    %386 = vsyncpa [#allocation7], 1
    %s387 = scalar_lea.sflag [#allocation7], 1
    %388 = vsyncpa %s387, 1
    %389 = vsyncpa [#allocation5], 1
    %s390 = scalar_lea.sflag [#allocation5], 1
    %391 = vsyncpa %s390, 1

</llo_original>
